<compile_context>
chip_gen: v7x
topology: tpu7x:2x2x1
jax: 0.10.0
libtpu: 0.0.40
codegen_flags: <defaults>
</compile_context>

<pallas_src>
import functools

import jax
import jax.numpy as jnp
import numpy as np
from jax.experimental import pallas as pl
from jax.experimental.pallas import tpu as pltpu

LOG_STD_MIN = -5.0
LOG_STD_MAX = 2.0
_LANES = 128  # TPU lane width; head output is padded to a multiple of this.


def actor_fwd_kernel(obs_ref, lat_ref, w1o_ref, w1l_ref, b1_ref,
                     w2_ref, b2_ref, wh_ref, bh_ref, out_ref, *, action_dim):
    """3-layer MLP trunk + log_std squash on one batch tile.

    Weights may be bf16 (MXU operands); accumulation, biases and all
    elementwise math (tanh / exp / clip) stay in f32. The output is a single
    lane-dense (tile, 128) slab: lanes [0,A) = mu, lanes [A,2A) = std.
    """
    cdt = w2_ref.dtype  # MXU operand dtype (f32 or bf16)

    # layer 1: split-K matmul over (obs | lat) -- avoids a host-side concat.
    h1 = (jnp.dot(obs_ref[...], w1o_ref[...], preferred_element_type=jnp.float32)
          + jnp.dot(lat_ref[...], w1l_ref[...], preferred_element_type=jnp.float32)
          + b1_ref[...])
    h1 = jnp.maximum(h1, 0.0).astype(cdt)

    # layer 2
    h2 = jnp.dot(h1, w2_ref[...], preferred_element_type=jnp.float32) + b2_ref[...]
    h2 = jnp.maximum(h2, 0.0).astype(cdt)

    # fused head: one lane-dense (tile, 128) matmul; mu & log_std columns packed.
    raw = jnp.dot(h2, wh_ref[...], preferred_element_type=jnp.float32) + bh_ref[...]

    # bounded_actor == False branch: mu.clamp(-10, 10)  (applies to lanes [0,A))
    mu_val = jnp.clip(raw, -10.0, 10.0)
    # clamp_action_logstd == False branch: tanh squash into [LOG_STD_MIN, LOG_STD_MAX]
    # then std = exp(log_std)  (applies to lanes [A,2A))
    ls = jnp.tanh(raw)
    ls = LOG_STD_MIN + 0.5 * (LOG_STD_MAX - LOG_STD_MIN) * (ls + 1.0)
    std_val = jnp.exp(ls)

    lane = jax.lax.broadcasted_iota(jnp.int32, raw.shape, dimension=1)
    out = jnp.where(lane < action_dim, mu_val,
                    jnp.where(lane < 2 * action_dim, std_val, 0.0))
    out_ref[...] = out


def _round_up(x, m):
    return -(-x // m) * m


def _choose_batch_tile(batch, max_tile=1024):
    """Big tiles amortize per-step overhead; >=2 grid steps feeds both v7x TCs."""
    if batch <= 16:
        return 16
    half = _round_up(-(-batch // 2), 16)  # ceil(B/2), rounded up to mult of 16
    return int(min(max_tile, half))


@functools.partial(jax.jit, static_argnames=("use_bf16", "max_batch_tile"))
def diag_gaussian_option_actor_forward(obs, lat, params, *,
                                       use_bf16=True, max_batch_tile=1024):
    """Returns (mu, std) of the Normal distribution produced by forward()."""
    w1, b1, w2, b2, wh, bh = params
    obs_dim = obs.shape[-1]
    lat_dim = lat.shape[-1]
    action_dim = wh.shape[-1] // 2
    H1 = w1.shape[1]
    H2 = w2.shape[1]
    head_lanes = max(_LANES, _round_up(2 * action_dim, _LANES))

    compute_dtype = jnp.bfloat16 if use_bf16 else jnp.float32

    # --- operand prep (tiny, weight-sized XLA ops, fused under jit) ---
    w1o = w1[:obs_dim].astype(compute_dtype)
    w1l = w1[obs_dim:].astype(compute_dtype)
    w2c = w2.astype(compute_dtype)
    wh_p = jnp.zeros((H2, head_lanes), compute_dtype).at[:, :2 * action_dim].set(
        wh.astype(compute_dtype))
    b1f = b1.astype(jnp.float32).reshape(1, H1)
    b2f = b2.astype(jnp.float32).reshape(1, H2)
    bh_p = jnp.zeros((1, head_lanes), jnp.float32).at[:, :2 * action_dim].set(
        bh.astype(jnp.float32).reshape(1, 2 * action_dim))

    obs_c = obs.astype(compute_dtype)
    lat_c = lat.astype(compute_dtype)

    B = obs.shape[0]
    tile = _choose_batch_tile(B, max_batch_tile)
    B_pad = _round_up(B, tile)
    if B_pad != B:
        obs_c = jnp.pad(obs_c, ((0, B_pad - B), (0, 0)))
        lat_c = jnp.pad(lat_c, ((0, B_pad - B), (0, 0)))

    # Weight / bias blocks: full array, constant index_map -> stays in VMEM,
    # no re-DMA across grid steps.
    full = lambda a: pl.BlockSpec(a.shape, lambda i: (0, 0))

    out = pl.pallas_call(
        functools.partial(actor_fwd_kernel, action_dim=action_dim),
        out_shape=jax.ShapeDtypeStruct((B_pad, head_lanes), jnp.float32),
        grid_spec=pltpu.PrefetchScalarGridSpec(
            num_scalar_prefetch=0,
            grid=(B_pad // tile,),
            in_specs=[
                pl.BlockSpec((tile, obs_dim), lambda i: (i, 0)),   # obs tile
                pl.BlockSpec((tile, lat_dim), lambda i: (i, 0)),   # lat tile
                full(w1o), full(w1l), full(b1f),
                full(w2c), full(b2f),
                full(wh_p), full(bh_p),
            ],
            out_specs=pl.BlockSpec((tile, head_lanes), lambda i: (i, 0)),
        ),
        compiler_params=pltpu.CompilerParams(
            dimension_semantics=("parallel",)),
    )(obs_c, lat_c, w1o, w1l, b1f, w2c, b2f, wh_p, bh_p)

    mu = out[:B, :action_dim]
    std = out[:B, action_dim:2 * action_dim]
    return mu, std


def make_params(key, input_dim, hidden_dims, action_dim):
    """Deterministic synthetic trunk weights: (in, out) layout, zero biases."""
    dims = [input_dim] + list(hidden_dims) + [2 * action_dim]
    keys = jax.random.split(key, len(dims) - 1)
    params = []
    for i in range(len(dims) - 1):
        w = jax.random.normal(keys[i], (dims[i], dims[i + 1]), jnp.float32)
        w = w * (1.0 / np.sqrt(dims[i]))
        b = jnp.zeros((1, dims[i + 1]), jnp.float32)
        params += [w, b]
    return tuple(params)  # (w1, b1, w2, b2, w_head, b_head)


def reference_forward(obs, lat, params, *, compute_dtype=jnp.float32):
    """Pure-JAX reference; matches the kernel's MXU operand dtype."""
    w1, b1, w2, b2, wh, bh = params
    cd = compute_dtype
    x = jnp.concatenate([obs, lat], axis=-1)
    h = jnp.dot(x.astype(cd), w1.astype(cd),
                preferred_element_type=jnp.float32) + b1
    h = jnp.maximum(h, 0.0)
    h = jnp.dot(h.astype(cd), w2.astype(cd),
                preferred_element_type=jnp.float32) + b2
    h = jnp.maximum(h, 0.0)
    out = jnp.dot(h.astype(cd), wh.astype(cd),
                  preferred_element_type=jnp.float32) + bh
    A = wh.shape[-1] // 2
    mu, log_std = out[:, :A], out[:, A:]
    log_std = jnp.tanh(log_std)
    log_std = LOG_STD_MIN + 0.5 * (LOG_STD_MAX - LOG_STD_MIN) * (log_std + 1.0)
    std = jnp.exp(log_std)
    mu = jnp.clip(mu, -10.0, 10.0)
    return mu, std


if __name__ == "__main__":
    key = jax.random.PRNGKey(0)
    k_obs, k_lat, k_par = jax.random.split(key, 3)

    obs_dim, lat_dim, action_dim = 28, 4, 6
    hidden_dims = (64, 64)
    params = make_params(k_par, obs_dim + lat_dim, hidden_dims, action_dim)

    # --- f32 path, tiny batch (single grid step), tight tolerance ---
    B1 = 8
    obs = jax.random.normal(k_obs, (B1, obs_dim), jnp.float32)
    lat = jax.random.normal(k_lat, (B1, lat_dim), jnp.float32)
    mu, std = diag_gaussian_option_actor_forward(obs, lat, params, use_bf16=False)
    jax.block_until_ready((mu, std))
    mu_r, std_r = reference_forward(obs, lat, params, compute_dtype=jnp.float32)
    np.testing.assert_allclose(np.asarray(mu), np.asarray(mu_r), rtol=1e-4, atol=1e-4)
    np.testing.assert_allclose(np.asarray(std), np.asarray(std_r), rtol=1e-4, atol=1e-4)

    # --- bf16 MXU path, non-multiple batch (exercises padding + >=2 grid steps) ---
    B2 = 50
    obs2 = jax.random.normal(jax.random.PRNGKey(1), (B2, obs_dim), jnp.float32)
    lat2 = jax.random.normal(jax.random.PRNGKey(2), (B2, lat_dim), jnp.float32)
    mu2, std2 = diag_gaussian_option_actor_forward(obs2, lat2, params, use_bf16=True)
    jax.block_until_ready((mu2, std2))
    mu2_r, std2_r = reference_forward(obs2, lat2, params, compute_dtype=jnp.bfloat16)
    np.testing.assert_allclose(np.asarray(mu2), np.asarray(mu2_r), rtol=2e-2, atol=2e-2)
    np.testing.assert_allclose(np.asarray(std2), np.asarray(std2_r), rtol=2e-2, atol=2e-2)

    # TODO(synk): the torch.distributions.Normal object (and SquashedNormal for
    # bounded_actor=True, rsample/log_prob) is host-side glue; the kernel
    # produces only the distribution parameters (mu, std).
    print("KERNEL_OK")
</pallas_src>

<mosaic_0001>
module attributes {stable_mosaic.version = 11 : i64} {
  func.func @actor_fwd_kernel(%arg0: i32, %arg1: memref<16x28xf32, #tpu.memory_space<vmem>>, %arg2: memref<16x4xf32, #tpu.memory_space<vmem>>, %arg3: memref<28x64xf32, #tpu.memory_space<vmem>>, %arg4: memref<4x64xf32, #tpu.memory_space<vmem>>, %arg5: memref<1x64xf32, #tpu.memory_space<vmem>>, %arg6: memref<64x64xf32, #tpu.memory_space<vmem>>, %arg7: memref<1x64xf32, #tpu.memory_space<vmem>>, %arg8: memref<64x128xf32, #tpu.memory_space<vmem>>, %arg9: memref<1x128xf32, #tpu.memory_space<vmem>>, %arg10: memref<16x128xf32, #tpu.memory_space<vmem>>) attributes {dimension_semantics = [#tpu.dimension_semantics<parallel>], iteration_bounds = array<i64: 1>, scalar_prefetch = 0 : i64, scratch_operands = 0 : i64, tpu.core_type = #tpu.core_type<tc>, window_params = [{transform_indices = @transform_0, window_bounds = array<i64: 16, 28>}, {transform_indices = @transform_1, window_bounds = array<i64: 16, 4>}, {pipeline_mode = #tpu.pipeline_mode<synchronous>, transform_indices = @transform_2, window_bounds = array<i64: 28, 64>}, {pipeline_mode = #tpu.pipeline_mode<synchronous>, transform_indices = @transform_3, window_bounds = array<i64: 4, 64>}, {pipeline_mode = #tpu.pipeline_mode<synchronous>, transform_indices = @transform_4, window_bounds = array<i64: 1, 64>}, {pipeline_mode = #tpu.pipeline_mode<synchronous>, transform_indices = @transform_5, window_bounds = array<i64: 64, 64>}, {pipeline_mode = #tpu.pipeline_mode<synchronous>, transform_indices = @transform_6, window_bounds = array<i64: 1, 64>}, {pipeline_mode = #tpu.pipeline_mode<synchronous>, transform_indices = @transform_7, window_bounds = array<i64: 64, 128>}, {pipeline_mode = #tpu.pipeline_mode<synchronous>, transform_indices = @transform_8, window_bounds = array<i64: 1, 128>}, {transform_indices = @transform_9, window_bounds = array<i64: 16, 128>}]} {
    %c0 = arith.constant 0 : index
    %c0_0 = arith.constant 0 : index
    %0 = vector.load %arg1[%c0, %c0_0] : memref<16x28xf32, #tpu.memory_space<vmem>>, vector<16x28xf32>
    %c0_1 = arith.constant 0 : index
    %c0_2 = arith.constant 0 : index
    %1 = vector.load %arg3[%c0_1, %c0_2] : memref<28x64xf32, #tpu.memory_space<vmem>>, vector<28x64xf32>
    %cst = arith.constant dense<0.000000e+00> : vector<16x64xf32>
    %2 = tpu.matmul %0, %1, %cst {dimension_numbers = #tpu.dot_dimension_numbers<[1], [0], [0], [1], [0, 0, 1, 1], [], []>} : vector<16x28xf32>, vector<28x64xf32>, vector<16x64xf32> -> vector<16x64xf32>
    %c0_3 = arith.constant 0 : index
    %c0_4 = arith.constant 0 : index
    %3 = vector.load %arg2[%c0_3, %c0_4] : memref<16x4xf32, #tpu.memory_space<vmem>>, vector<16x4xf32>
    %c0_5 = arith.constant 0 : index
    %c0_6 = arith.constant 0 : index
    %4 = vector.load %arg4[%c0_5, %c0_6] : memref<4x64xf32, #tpu.memory_space<vmem>>, vector<4x64xf32>
    %cst_7 = arith.constant dense<0.000000e+00> : vector<16x64xf32>
    %5 = tpu.matmul %3, %4, %cst_7 {dimension_numbers = #tpu.dot_dimension_numbers<[1], [0], [0], [1], [0, 0, 1, 1], [], []>} : vector<16x4xf32>, vector<4x64xf32>, vector<16x64xf32> -> vector<16x64xf32>
    %6 = arith.addf %2, %5 : vector<16x64xf32>
    %c0_8 = arith.constant 0 : index
    %c0_9 = arith.constant 0 : index
    %7 = vector.load %arg5[%c0_8, %c0_9] : memref<1x64xf32, #tpu.memory_space<vmem>>, vector<1x64xf32>
    %8 = vector.broadcast %7 : vector<1x64xf32> to vector<16x64xf32>
    %9 = arith.addf %6, %8 : vector<16x64xf32>
    %cst_10 = arith.constant 0.000000e+00 : f32
    %10 = vector.broadcast %cst_10 : f32 to vector<16x64xf32>
    %11 = arith.maximumf %9, %10 : vector<16x64xf32>
    %c0_11 = arith.constant 0 : index
    %c0_12 = arith.constant 0 : index
    %12 = vector.load %arg6[%c0_11, %c0_12] : memref<64x64xf32, #tpu.memory_space<vmem>>, vector<64x64xf32>
    %cst_13 = arith.constant dense<0.000000e+00> : vector<16x64xf32>
    %13 = tpu.matmul %11, %12, %cst_13 {dimension_numbers = #tpu.dot_dimension_numbers<[1], [0], [0], [1], [0, 0, 1, 1], [], []>} : vector<16x64xf32>, vector<64x64xf32>, vector<16x64xf32> -> vector<16x64xf32>
    %c0_14 = arith.constant 0 : index
    %c0_15 = arith.constant 0 : index
    %14 = vector.load %arg7[%c0_14, %c0_15] : memref<1x64xf32, #tpu.memory_space<vmem>>, vector<1x64xf32>
    %15 = vector.broadcast %14 : vector<1x64xf32> to vector<16x64xf32>
    %16 = arith.addf %13, %15 : vector<16x64xf32>
    %cst_16 = arith.constant 0.000000e+00 : f32
    %17 = vector.broadcast %cst_16 : f32 to vector<16x64xf32>
    %18 = arith.maximumf %16, %17 : vector<16x64xf32>
    %c0_17 = arith.constant 0 : index
    %c0_18 = arith.constant 0 : index
    %19 = vector.load %arg8[%c0_17, %c0_18] : memref<64x128xf32, #tpu.memory_space<vmem>>, vector<64x128xf32>
    %cst_19 = arith.constant dense<0.000000e+00> : vector<16x128xf32>
    %20 = tpu.matmul %18, %19, %cst_19 {dimension_numbers = #tpu.dot_dimension_numbers<[1], [0], [0], [1], [0, 0, 1, 1], [], []>} : vector<16x64xf32>, vector<64x128xf32>, vector<16x128xf32> -> vector<16x128xf32>
    %c0_20 = arith.constant 0 : index
    %c0_21 = arith.constant 0 : index
    %21 = vector.load %arg9[%c0_20, %c0_21] : memref<1x128xf32, #tpu.memory_space<vmem>>, vector<1x128xf32>
    %22 = vector.broadcast %21 : vector<1x128xf32> to vector<16x128xf32>
    %23 = arith.addf %20, %22 : vector<16x128xf32>
    %cst_22 = arith.constant -1.000000e+01 : f32
    %cst_23 = arith.constant 1.000000e+01 : f32
    %24 = vector.broadcast %cst_22 : f32 to vector<16x128xf32>
    %25 = arith.maximumf %24, %23 : vector<16x128xf32>
    %26 = vector.broadcast %cst_23 : f32 to vector<16x128xf32>
    %27 = arith.minimumf %26, %25 : vector<16x128xf32>
    %28 = math.tanh %23 : vector<16x128xf32>
    %cst_24 = arith.constant 1.000000e+00 : f32
    %29 = vector.broadcast %cst_24 : f32 to vector<16x128xf32>
    %30 = arith.addf %28, %29 : vector<16x128xf32>
    %cst_25 = arith.constant 3.500000e+00 : f32
    %31 = vector.broadcast %cst_25 : f32 to vector<16x128xf32>
    %32 = arith.mulf %31, %30 : vector<16x128xf32>
    %cst_26 = arith.constant -5.000000e+00 : f32
    %33 = vector.broadcast %cst_26 : f32 to vector<16x128xf32>
    %34 = arith.addf %33, %32 : vector<16x128xf32>
    %35 = math.exp %34 : vector<16x128xf32>
    %36 = tpu.iota {dimensions = array<i32: 1>} : vector<16x128xi32>
    %c6_i32 = arith.constant 6 : i32
    %37 = vector.broadcast %c6_i32 : i32 to vector<16x128xi32>
    %38 = arith.cmpi slt, %36, %37 : vector<16x128xi32>
    %c12_i32 = arith.constant 12 : i32
    %39 = vector.broadcast %c12_i32 : i32 to vector<16x128xi32>
    %40 = arith.cmpi slt, %36, %39 : vector<16x128xi32>
    %cst_27 = arith.constant 0.000000e+00 : f32
    %41 = vector.broadcast %cst_27 : f32 to vector<16x128xf32>
    %42 = arith.select %40, %35, %41 : vector<16x128xi1>, vector<16x128xf32>
    %43 = arith.select %38, %27, %42 : vector<16x128xi1>, vector<16x128xf32>
    %c0_28 = arith.constant 0 : index
    %c0_29 = arith.constant 0 : index
    %44 = vector.load %arg10[%c0_28, %c0_29] : memref<16x128xf32, #tpu.memory_space<vmem>>, vector<16x128xf32>
    tpu.vector_store %arg10[%c0_28, %c0_29], %43 {strides = array<i32>} : memref<16x128xf32, #tpu.memory_space<vmem>>, vector<16x128xf32>,
    return
  }
  func.func @transform_0(%arg0: i32) -> (i32, i32) {
    %c0_i32 = arith.constant 0 : i32
    %c0_i32_0 = arith.constant 0 : i32
    return %arg0, %c0_i32 : i32, i32
  }
  func.func @transform_1(%arg0: i32) -> (i32, i32) {
    %c0_i32 = arith.constant 0 : i32
    %c0_i32_0 = arith.constant 0 : i32
    return %arg0, %c0_i32 : i32, i32
  }
  func.func @transform_2(%arg0: i32) -> (i32, i32) {
    %c0_i32 = arith.constant 0 : i32
    %c0_i32_0 = arith.constant 0 : i32
    %c0_i32_1 = arith.constant 0 : i32
    return %c0_i32, %c0_i32_0 : i32, i32
  }
  func.func @transform_3(%arg0: i32) -> (i32, i32) {
    %c0_i32 = arith.constant 0 : i32
    %c0_i32_0 = arith.constant 0 : i32
    %c0_i32_1 = arith.constant 0 : i32
    return %c0_i32, %c0_i32_0 : i32, i32
  }
  func.func @transform_4(%arg0: i32) -> (i32, i32) {
    %c0_i32 = arith.constant 0 : i32
    %c0_i32_0 = arith.constant 0 : i32
    %c0_i32_1 = arith.constant 0 : i32
    return %c0_i32, %c0_i32_0 : i32, i32
  }
  func.func @transform_5(%arg0: i32) -> (i32, i32) {
    %c0_i32 = arith.constant 0 : i32
    %c0_i32_0 = arith.constant 0 : i32
    %c0_i32_1 = arith.constant 0 : i32
    return %c0_i32, %c0_i32_0 : i32, i32
  }
  func.func @transform_6(%arg0: i32) -> (i32, i32) {
    %c0_i32 = arith.constant 0 : i32
    %c0_i32_0 = arith.constant 0 : i32
    %c0_i32_1 = arith.constant 0 : i32
    return %c0_i32, %c0_i32_0 : i32, i32
  }
  func.func @transform_7(%arg0: i32) -> (i32, i32) {
    %c0_i32 = arith.constant 0 : i32
    %c0_i32_0 = arith.constant 0 : i32
    %c0_i32_1 = arith.constant 0 : i32
    return %c0_i32, %c0_i32_0 : i32, i32
  }
  func.func @transform_8(%arg0: i32) -> (i32, i32) {
    %c0_i32 = arith.constant 0 : i32
    %c0_i32_0 = arith.constant 0 : i32
    %c0_i32_1 = arith.constant 0 : i32
    return %c0_i32, %c0_i32_0 : i32, i32
  }
  func.func @transform_9(%arg0: i32) -> (i32, i32) {
    %c0_i32 = arith.constant 0 : i32
    %c0_i32_0 = arith.constant 0 : i32
    return %arg0, %c0_i32 : i32, i32
  }
}

</mosaic_0001>

<llo_original>
// kernel: diag_gaussian_option_actor_forward.1
$region0: #{diag_gaussian_option_actor_forward.1}
  #allocation0 [shape = 'u32[]', space=smem, size = 0x4, offset = 0x4, fixed_abs, tag = 'smem constant byte address 0x4 - core index']
  #allocation1 [shape = 'u32[144,128]{1,0:T(1,128)}', space=vmem, size = 0x12000, scoped, tag = 'internal scratch']
  %s0 = inlined_call_operand.vmem [shape: f32[16,28], index: 0, kind: input, shape index: {}]
  %s1 = inlined_call_operand.vmem [shape: f32[16,4], index: 1, kind: input, shape index: {}]
  %s2 = inlined_call_operand.vmem [shape: f32[28,64], index: 2, kind: input, shape index: {}]
  %s3 = inlined_call_operand.vmem [shape: f32[4,64], index: 3, kind: input, shape index: {}]
  %s4 = inlined_call_operand.vmem [shape: f32[1,64], index: 4, kind: input, shape index: {}]
  %s5 = inlined_call_operand.vmem [shape: f32[64,64], index: 5, kind: input, shape index: {}]
  %s6 = inlined_call_operand.vmem [shape: f32[1,64], index: 6, kind: input, shape index: {}]
  %s7 = inlined_call_operand.vmem [shape: f32[64,128], index: 7, kind: input, shape index: {}]
  %s8 = inlined_call_operand.vmem [shape: f32[1,128], index: 8, kind: input, shape index: {}]
  %s9 = inlined_call_operand.vmem [shape: f32[16,128], index: 9, kind: output, shape index: {}]
  %s10 = sld [smem:[#allocation0]]
  $region46: #{diag_gaussian_option_actor_forward.1} parent=0
    _
  %s12 = ssub.s32 1, %s10
  %s13 = scalar_select 0, %s12, %s10
  // Predicated region
  $region2: #{diag_gaussian_option_actor_forward.1} parent=0 // pred_check
    _
  $region3: #{diag_gaussian_option_actor_forward.1} parent=0 // pred_check_branch
    %15 = sbr.rel (0) target = $region5
  $region4: #{diag_gaussian_option_actor_forward.1} parent=0 // pred_region
    _
  $region5: #{diag_gaussian_option_actor_forward.1} parent=0 // pred_fallthru
    _
  // Predicated region
  $region6: #{diag_gaussian_option_actor_forward.1} parent=0 // pred_check
    _
  $region7: #{diag_gaussian_option_actor_forward.1} parent=0 // pred_check_branch
    %17 = sbr.rel (0) target = $region9
  $region8: #{diag_gaussian_option_actor_forward.1} parent=0 // pred_region
    _
  $region9: #{diag_gaussian_option_actor_forward.1} parent=0 // pred_fallthru
    _
  // Predicated region
  $region10: #{diag_gaussian_option_actor_forward.1} parent=0 // pred_check
    _
  $region11: #{diag_gaussian_option_actor_forward.1} parent=0 // pred_check_branch
    %19 = sbr.rel (0) target = $region13
  $region12: #{diag_gaussian_option_actor_forward.1} parent=0 // pred_region
    _
  $region13: #{diag_gaussian_option_actor_forward.1} parent=0 // pred_fallthru
    _
  // Predicated region
  $region14: #{diag_gaussian_option_actor_forward.1} parent=0 // pred_check
    _
  $region15: #{diag_gaussian_option_actor_forward.1} parent=0 // pred_check_branch
    %21 = sbr.rel (0) target = $region17
  $region16: #{diag_gaussian_option_actor_forward.1} parent=0 // pred_region
    _
  $region17: #{diag_gaussian_option_actor_forward.1} parent=0 // pred_fallthru
    _
  // Predicated region
  $region18: #{diag_gaussian_option_actor_forward.1} parent=0 // pred_check
    _
  $region19: #{diag_gaussian_option_actor_forward.1} parent=0 // pred_check_branch
    %23 = sbr.rel (0) target = $region21
  $region20: #{diag_gaussian_option_actor_forward.1} parent=0 // pred_region
    _
  $region21: #{diag_gaussian_option_actor_forward.1} parent=0 // pred_fallthru
    _
  // Predicated region
  $region22: #{diag_gaussian_option_actor_forward.1} parent=0 // pred_check
    _
  $region23: #{diag_gaussian_option_actor_forward.1} parent=0 // pred_check_branch
    %25 = sbr.rel (0) target = $region25
  $region24: #{diag_gaussian_option_actor_forward.1} parent=0 // pred_region
    _
  $region25: #{diag_gaussian_option_actor_forward.1} parent=0 // pred_fallthru
    _
  // Predicated region
  $region26: #{diag_gaussian_option_actor_forward.1} parent=0 // pred_check
    _
  $region27: #{diag_gaussian_option_actor_forward.1} parent=0 // pred_check_branch
    %27 = sbr.rel (0) target = $region29
  $region28: #{diag_gaussian_option_actor_forward.1} parent=0 // pred_region
    _
  $region29: #{diag_gaussian_option_actor_forward.1} parent=0 // pred_fallthru
    _
  // Predicated region
  $region30: #{diag_gaussian_option_actor_forward.1} parent=0 // pred_check
    _
  $region31: #{diag_gaussian_option_actor_forward.1} parent=0 // pred_check_branch
    %29 = sbr.rel (0) target = $region33
  $region32: #{diag_gaussian_option_actor_forward.1} parent=0 // pred_region
    _
  $region33: #{diag_gaussian_option_actor_forward.1} parent=0 // pred_fallthru
    _
  // Predicated region
  $region34: #{diag_gaussian_option_actor_forward.1} parent=0 // pred_check
    _
  $region35: #{diag_gaussian_option_actor_forward.1} parent=0 // pred_check_branch
    %31 = sbr.rel (0) target = $region37
  $region36: #{diag_gaussian_option_actor_forward.1} parent=0 // pred_region
    _
  $region37: #{diag_gaussian_option_actor_forward.1} parent=0 // pred_fallthru
    _
  %v32 = vld [vmem:[%s0] sm:$0xff]
  %v33 = vld [vmem:[%s0 + $0x8] sm:$0xff]
  %v34 = vld [vmem:[%s2] sm:$0xff]
  %v35 = vld [vmem:[%s2 + $0x8] sm:$0xff]
  %v36 = vld [vmem:[%s2 + $0x10] sm:$0xff]
  %v37 = vld [vmem:[%s2 + $0x18] sm:$0xf]
  %v38 = vld [vmem:[%s1] sm:$0xff]
  %v39 = vld [vmem:[%s1 + $0x8] sm:$0xff]
  %v40 = vld [vmem:[%s3] sm:$0xf]
  %vm41 = vcmask 31744
  %v43 = vsel %vm41, %v38, 0
  %v46 = vsel %vm41, %v39, 0
  %vm48 = vcmask 1043456
  %v50 = vsel %vm48, %v40, 0
  %52 = vmatprep.subr.mxu0 0.0
  %53 = vmatpush1.msra.mxu0 %v50
  %54 = vmatprep.subr.mxu0 0.0
  %55 = vmatpush1.msra.mxu0 0.0
  %56 = vmatprep.subr.mxu0 0.0
  %57 = vmatpush1.msra.mxu0 0.0
  %58 = vmatprep.subr.mxu0 0.0
  %59 = vmatpush1.msra.mxu0 0.0
  %60 = vmatprep.subr.mxu0 0.0
  %61 = vmatpush1.msra.mxu0 0.0
  %62 = vmatprep.subr.mxu0 0.0
  %63 = vmatpush1.msra.mxu0 0.0
  %64 = vmatprep.subr.mxu0 0.0
  %65 = vmatpush1.msra.mxu0 0.0
  %66 = vmatprep.subr.mxu0 0.0
  %67 = vmatpush1.msra.mxu0 0.0
  %68 = vmatprep.subr.mxu0 0.0
  %69 = vmatpush1.msra.mxu0 0.0
  %70 = vmatprep.subr.mxu0 0.0
  %71 = vmatpush1.msra.mxu0 0.0
  %72 = vmatprep.subr.mxu0 0.0
  %73 = vmatpush1.msra.mxu0 0.0
  %74 = vmatprep.subr.mxu0 0.0
  %75 = vmatpush1.msra.mxu0 0.0
  %76 = vmatprep.subr.mxu0 0.0
  %77 = vmatpush1.msra.mxu0 0.0
  %78 = vmatprep.subr.mxu0 0.0
  %79 = vmatpush1.msra.mxu0 0.0
  %80 = vmatprep.subr.mxu0 0.0
  %81 = vmatpush1.msra.mxu0 0.0
  %82 = vmatprep.subr.mxu0 0.0
  %83 = vmatpush1.msra.mxu0 0.0
  %84 = vmatprep.subr.mxu0 0.0
  %85 = vmatpush1.msra.mxu0 0.0
  %86 = vmatprep.subr.mxu0 0.0
  %87 = vmatpush1.msra.mxu0 0.0
  %88 = vmatprep.subr.mxu0 0.0
  %89 = vmatpush1.msra.mxu0 0.0
  %90 = vmatprep.subr.mxu0 0.0
  %91 = vmatpush1.msra.mxu0 0.0
  %92 = vmatprep.subr.mxu0 0.0
  %93 = vmatpush1.msra.mxu0 0.0
  %94 = vmatprep.subr.mxu0 0.0
  %95 = vmatpush1.msra.mxu0 0.0
  %96 = vmatprep.subr.mxu0 0.0
  %97 = vmatpush1.msra.mxu0 0.0
  %98 = vmatprep.subr.mxu0 0.0
  %99 = vmatpush1.msra.mxu0 0.0
  %100 = vmatprep.subr.mxu0 0.0
  %101 = vmatpush1.msra.mxu0 0.0
  %102 = vmatprep.subr.mxu0 0.0
  %103 = vmatpush1.msra.mxu0 0.0
  %104 = vmatprep.subr.mxu0 0.0
  %105 = vmatpush1.msra.mxu0 0.0
  %106 = vmatprep.subr.mxu0 0.0
  %107 = vmatpush1.msra.mxu0 0.0
  %108 = vmatprep.subr.mxu0 0.0
  %109 = vmatpush1.msra.mxu0 0.0
  %110 = vmatprep.subr.mxu0 0.0
  %111 = vmatpush1.msra.mxu0 0.0
  %112 = vmatprep.subr.mxu0 0.0
  %113 = vmatpush1.msra.mxu0 0.0
  %114 = vmatprep.subr.mxu0 0.0
  %115 = vmatpush1.msra.mxu0 0.0
  %116 = vmatprep.mubr.f32.mxu0 0.0
  %117 = vmatmul.mubr.f32.gmra.mrb[0].mxu0 %v43
  %v118 = vpop.f32.mrb[0].mxu0
  %v119 = vadd.f32 0.0, %v118
  %v120 = vpop.f32.mrb[0].mxu0
  %121 = vmatprep.mubr.f32.mxu0 0.0
  %122 = vmatmul.mubr.f32.gmra.mrb[0].mxu0 %v46
  %v123 = vpop.f32.mrb[0].mxu0
  %v124 = vadd.f32 0.0, %v123
  %v125 = vpop.f32.mrb[0].mxu0
  %126 = vdwg.mxu0
  %vm127 = vcmask 228352
  %v129 = vsel %vm127, %v32, 0
  %v132 = vsel %vm127, %v33, 0
  %v135 = vsel %vm48, %v37, 0
  %137 = vmatprep.subr.mxu0 0.0
  %138 = vmatpush1.msra.mxu0 %v34
  %139 = vmatprep.subr.mxu0 0.0
  %140 = vmatpush1.msra.mxu0 %v35
  %141 = vmatprep.subr.mxu0 0.0
  %142 = vmatpush1.msra.mxu0 %v36
  %143 = vmatprep.subr.mxu0 0.0
  %144 = vmatpush1.msra.mxu0 %v135
  %145 = vmatprep.subr.mxu0 0.0
  %146 = vmatpush1.msra.mxu0 0.0
  %147 = vmatprep.subr.mxu0 0.0
  %148 = vmatpush1.msra.mxu0 0.0
  %149 = vmatprep.subr.mxu0 0.0
  %150 = vmatpush1.msra.mxu0 0.0
  %151 = vmatprep.subr.mxu0 0.0
  %152 = vmatpush1.msra.mxu0 0.0
  %153 = vmatprep.subr.mxu0 0.0
  %154 = vmatpush1.msra.mxu0 0.0
  %155 = vmatprep.subr.mxu0 0.0
  %156 = vmatpush1.msra.mxu0 0.0
  %157 = vmatprep.subr.mxu0 0.0
  %158 = vmatpush1.msra.mxu0 0.0
  %159 = vmatprep.subr.mxu0 0.0
  %160 = vmatpush1.msra.mxu0 0.0
  %161 = vmatprep.subr.mxu0 0.0
  %162 = vmatpush1.msra.mxu0 0.0
  %163 = vmatprep.subr.mxu0 0.0
  %164 = vmatpush1.msra.mxu0 0.0
  %165 = vmatprep.subr.mxu0 0.0
  %166 = vmatpush1.msra.mxu0 0.0
  %167 = vmatprep.subr.mxu0 0.0
  %168 = vmatpush1.msra.mxu0 0.0
  %169 = vmatprep.subr.mxu0 0.0
  %170 = vmatpush1.msra.mxu0 0.0
  %171 = vmatprep.subr.mxu0 0.0
  %172 = vmatpush1.msra.mxu0 0.0
  %173 = vmatprep.subr.mxu0 0.0
  %174 = vmatpush1.msra.mxu0 0.0
  %175 = vmatprep.subr.mxu0 0.0
  %176 = vmatpush1.msra.mxu0 0.0
  %177 = vmatprep.subr.mxu0 0.0
  %178 = vmatpush1.msra.mxu0 0.0
  %179 = vmatprep.subr.mxu0 0.0
  %180 = vmatpush1.msra.mxu0 0.0
  %181 = vmatprep.subr.mxu0 0.0
  %182 = vmatpush1.msra.mxu0 0.0
  %183 = vmatprep.subr.mxu0 0.0
  %184 = vmatpush1.msra.mxu0 0.0
  %185 = vmatprep.subr.mxu0 0.0
  %186 = vmatpush1.msra.mxu0 0.0
  %187 = vmatprep.subr.mxu0 0.0
  %188 = vmatpush1.msra.mxu0 0.0
  %189 = vmatprep.subr.mxu0 0.0
  %190 = vmatpush1.msra.mxu0 0.0
  %191 = vmatprep.subr.mxu0 0.0
  %192 = vmatpush1.msra.mxu0 0.0
  %193 = vmatprep.subr.mxu0 0.0
  %194 = vmatpush1.msra.mxu0 0.0
  %195 = vmatprep.subr.mxu0 0.0
  %196 = vmatpush1.msra.mxu0 0.0
  %197 = vmatprep.subr.mxu0 0.0
  %198 = vmatpush1.msra.mxu0 0.0
  %199 = vmatprep.subr.mxu0 0.0
  %200 = vmatpush1.msra.mxu0 0.0
  %201 = vmatprep.mubr.f32.mxu0 0.0
  %202 = vmatmul.mubr.f32.gmra.mrb[0].mxu0 %v129
  %v203 = vpop.f32.mrb[0].mxu0
  %v204 = vadd.f32 %v119, %v203
  %v205 = vpop.f32.mrb[0].mxu0
  %206 = vmatprep.mubr.f32.mxu0 0.0
  %207 = vmatmul.mubr.f32.gmra.mrb[0].mxu0 %v132
  %v208 = vpop.f32.mrb[0].mxu0
  %v209 = vadd.f32 %v124, %v208
  %v210 = vpop.f32.mrb[0].mxu0
  %211 = vdwg.mxu0
  %v212 = vld [vmem:[%s4] sm:$0x1]
  %v214 = vlaneseq
  %v215 = vshrl.u32 %v214, 7
  %v216 = vsub.s32 0, %v215
  %v217 = vrot.slane %v212, %v216
  %v219 = vadd.f32 %v204, %v217
  %v220 = vadd.f32 %v209, %v217
  %v221 = vmax.f32 %v219, 0.0
  %v222 = vmax.f32 %v220, 0.0
  %v223 = vld [vmem:[%s5] sm:$0xff]
  %v224 = vld [vmem:[%s5 + $0x8] sm:$0xff]
  %v225 = vld [vmem:[%s5 + $0x10] sm:$0xff]
  %v226 = vld [vmem:[%s5 + $0x18] sm:$0xff]
  %v227 = vld [vmem:[%s5 + $0x20] sm:$0xff]
  %v228 = vld [vmem:[%s5 + $0x28] sm:$0xff]
  %v229 = vld [vmem:[%s5 + $0x30] sm:$0xff]
  %v230 = vld [vmem:[%s5 + $0x38] sm:$0xff]
  %v231 = vld [vmem:[%s6] sm:$0x1]
  %v233 = vlaneseq
  %v234 = vshrl.u32 %v233, 7
  %v235 = vsub.s32 0, %v234
  %v236 = vrot.slane %v231, %v235
  %vm238 = vcmask 523264
  %v240 = vsel %vm238, %v221, 0
  %v243 = vsel %vm238, %v222, 0
  %245 = vmatprep.subr.mxu0 0.0
  %246 = vmatpush1.msra.mxu0 %v223
  %247 = vmatprep.subr.mxu0 0.0
  %248 = vmatpush1.msra.mxu0 %v224
  %249 = vmatprep.subr.mxu0 0.0
  %250 = vmatpush1.msra.mxu0 %v225
  %251 = vmatprep.subr.mxu0 0.0
  %252 = vmatpush1.msra.mxu0 %v226
  %253 = vmatprep.subr.mxu0 0.0
  %254 = vmatpush1.msra.mxu0 %v227
  %255 = vmatprep.subr.mxu0 0.0
  %256 = vmatpush1.msra.mxu0 %v228
  %257 = vmatprep.subr.mxu0 0.0
  %258 = vmatpush1.msra.mxu0 %v229
  %259 = vmatprep.subr.mxu0 0.0
  %260 = vmatpush1.msra.mxu0 %v230
  %261 = vmatprep.subr.mxu0 0.0
  %262 = vmatpush1.msra.mxu0 0.0
  %263 = vmatprep.subr.mxu0 0.0
  %264 = vmatpush1.msra.mxu0 0.0
  %265 = vmatprep.subr.mxu0 0.0
  %266 = vmatpush1.msra.mxu0 0.0
  %267 = vmatprep.subr.mxu0 0.0
  %268 = vmatpush1.msra.mxu0 0.0
  %269 = vmatprep.subr.mxu0 0.0
  %270 = vmatpush1.msra.mxu0 0.0
  %271 = vmatprep.subr.mxu0 0.0
  %272 = vmatpush1.msra.mxu0 0.0
  %273 = vmatprep.subr.mxu0 0.0
  %274 = vmatpush1.msra.mxu0 0.0
  %275 = vmatprep.subr.mxu0 0.0
  %276 = vmatpush1.msra.mxu0 0.0
  %277 = vmatprep.subr.mxu0 0.0
  %278 = vmatpush1.msra.mxu0 0.0
  %279 = vmatprep.subr.mxu0 0.0
  %280 = vmatpush1.msra.mxu0 0.0
  %281 = vmatprep.subr.mxu0 0.0
  %282 = vmatpush1.msra.mxu0 0.0
  %283 = vmatprep.subr.mxu0 0.0
  %284 = vmatpush1.msra.mxu0 0.0
  %285 = vmatprep.subr.mxu0 0.0
  %286 = vmatpush1.msra.mxu0 0.0
  %287 = vmatprep.subr.mxu0 0.0
  %288 = vmatpush1.msra.mxu0 0.0
  %289 = vmatprep.subr.mxu0 0.0
  %290 = vmatpush1.msra.mxu0 0.0
  %291 = vmatprep.subr.mxu0 0.0
  %292 = vmatpush1.msra.mxu0 0.0
  %293 = vmatprep.subr.mxu0 0.0
  %294 = vmatpush1.msra.mxu0 0.0
  %295 = vmatprep.subr.mxu0 0.0
  %296 = vmatpush1.msra.mxu0 0.0
  %297 = vmatprep.subr.mxu0 0.0
  %298 = vmatpush1.msra.mxu0 0.0
  %299 = vmatprep.subr.mxu0 0.0
  %300 = vmatpush1.msra.mxu0 0.0
  %301 = vmatprep.subr.mxu0 0.0
  %302 = vmatpush1.msra.mxu0 0.0
  %303 = vmatprep.subr.mxu0 0.0
  %304 = vmatpush1.msra.mxu0 0.0
  %305 = vmatprep.subr.mxu0 0.0
  %306 = vmatpush1.msra.mxu0 0.0
  %307 = vmatprep.subr.mxu0 0.0
  %308 = vmatpush1.msra.mxu0 0.0
  %309 = vmatprep.mubr.f32.mxu0 0.0
  %310 = vmatmul.mubr.f32.gmra.mrb[0].mxu0 %v240
  %v311 = vpop.f32.mrb[0].mxu0
  %v312 = vadd.f32 %v236, %v311
  %v313 = vpop.f32.mrb[0].mxu0
  %314 = vmatprep.mubr.f32.mxu0 0.0
  %315 = vmatmul.mubr.f32.gmra.mrb[0].mxu0 %v243
  %v316 = vpop.f32.mrb[0].mxu0
  %v317 = vadd.f32 %v236, %v316
  %v318 = vpop.f32.mrb[0].mxu0
  %319 = vdwg.mxu0
  %v320 = vmax.f32 %v312, 0.0
  %v321 = vmax.f32 %v317, 0.0
  %v322 = vld [vmem:[%s7] sm:$0xff]
  %v323 = vld [vmem:[%s7 + $0x8] sm:$0xff]
  %v324 = vld [vmem:[%s7 + $0x10] sm:$0xff]
  %v325 = vld [vmem:[%s7 + $0x18] sm:$0xff]
  %v326 = vld [vmem:[%s7 + $0x20] sm:$0xff]
  %v327 = vld [vmem:[%s7 + $0x28] sm:$0xff]
  %v328 = vld [vmem:[%s7 + $0x30] sm:$0xff]
  %v329 = vld [vmem:[%s7 + $0x38] sm:$0xff]
  %v330 = vld [vmem:[%s8] sm:$0x1]
  %v332 = vlaneseq
  %v333 = vshrl.u32 %v332, 7
  %v334 = vsub.s32 0, %v333
  %v335 = vrot.slane %v330, %v334
  %v338 = vsel %vm238, %v320, 0
  %v341 = vsel %vm238, %v321, 0
  %343 = vmatprep.subr.mxu0 0.0
  %344 = vmatpush1.msra.mxu0 %v322
  %345 = vmatprep.subr.mxu0 0.0
  %346 = vmatpush1.msra.mxu0 %v323
  %347 = vmatprep.subr.mxu0 0.0
  %348 = vmatpush1.msra.mxu0 %v324
  %349 = vmatprep.subr.mxu0 0.0
  %350 = vmatpush1.msra.mxu0 %v325
  %351 = vmatprep.subr.mxu0 0.0
  %352 = vmatpush1.msra.mxu0 %v326
  %353 = vmatprep.subr.mxu0 0.0
  %354 = vmatpush1.msra.mxu0 %v327
  %355 = vmatprep.subr.mxu0 0.0
  %356 = vmatpush1.msra.mxu0 %v328
  %357 = vmatprep.subr.mxu0 0.0
  %358 = vmatpush1.msra.mxu0 %v329
  %359 = vmatprep.subr.mxu0 0.0
  %360 = vmatpush1.msra.mxu0 0.0
  %361 = vmatprep.subr.mxu0 0.0
  %362 = vmatpush1.msra.mxu0 0.0
  %363 = vmatprep.subr.mxu0 0.0
  %364 = vmatpush1.msra.mxu0 0.0
  %365 = vmatprep.subr.mxu0 0.0
  %366 = vmatpush1.msra.mxu0 0.0
  %367 = vmatprep.subr.mxu0 0.0
  %368 = vmatpush1.msra.mxu0 0.0
  %369 = vmatprep.subr.mxu0 0.0
  %370 = vmatpush1.msra.mxu0 0.0
  %371 = vmatprep.subr.mxu0 0.0
  %372 = vmatpush1.msra.mxu0 0.0
  %373 = vmatprep.subr.mxu0 0.0
  %374 = vmatpush1.msra.mxu0 0.0
  %375 = vmatprep.subr.mxu0 0.0
  %376 = vmatpush1.msra.mxu0 0.0
  %377 = vmatprep.subr.mxu0 0.0
  %378 = vmatpush1.msra.mxu0 0.0
  %379 = vmatprep.subr.mxu0 0.0
  %380 = vmatpush1.msra.mxu0 0.0
  %381 = vmatprep.subr.mxu0 0.0
  %382 = vmatpush1.msra.mxu0 0.0
  %383 = vmatprep.subr.mxu0 0.0
  %384 = vmatpush1.msra.mxu0 0.0
  %385 = vmatprep.subr.mxu0 0.0
  %386 = vmatpush1.msra.mxu0 0.0
  %387 = vmatprep.subr.mxu0 0.0
  %388 = vmatpush1.msra.mxu0 0.0
  %389 = vmatprep.subr.mxu0 0.0
  %390 = vmatpush1.msra.mxu0 0.0
  %391 = vmatprep.subr.mxu0 0.0
  %392 = vmatpush1.msra.mxu0 0.0
  %393 = vmatprep.subr.mxu0 0.0
  %394 = vmatpush1.msra.mxu0 0.0
  %395 = vmatprep.subr.mxu0 0.0
  %396 = vmatpush1.msra.mxu0 0.0
  %397 = vmatprep.subr.mxu0 0.0
  %398 = vmatpush1.msra.mxu0 0.0
  %399 = vmatprep.subr.mxu0 0.0
  %400 = vmatpush1.msra.mxu0 0.0
  %401 = vmatprep.subr.mxu0 0.0
  %402 = vmatpush1.msra.mxu0 0.0
  %403 = vmatprep.subr.mxu0 0.0
  %404 = vmatpush1.msra.mxu0 0.0
  %405 = vmatprep.subr.mxu0 0.0
  %406 = vmatpush1.msra.mxu0 0.0
  %407 = vmatprep.mubr.f32.mxu0 0.0
  %408 = vmatmul.mubr.f32.gmra.mrb[0].mxu0 %v338
  %v409 = vpop.f32.mrb[0].mxu0
  %v410 = vadd.f32 %v335, %v409
  %v411 = vpop.f32.mrb[0].mxu0
  %412 = vmatprep.mubr.f32.mxu0 0.0
  %413 = vmatmul.mubr.f32.gmra.mrb[0].mxu0 %v341
  %v414 = vpop.f32.mrb[0].mxu0
  %v415 = vadd.f32 %v335, %v414
  %v416 = vpop.f32.mrb[0].mxu0
  %417 = vdwg.mxu0
  %v418 = vmax.f32 %v410, -10.0
  %v419 = vmax.f32 %v415, -10.0
  %v420 = vmin.f32 %v418, 10.0
  %v421 = vmin.f32 %v419, 10.0
  %v422 = vtanh.pop %v410
  %v423 = vtanh.pop %v415
  %v424 = vadd.f32 %v422, 1.0
  %v425 = vadd.f32 %v423, 1.0
  %v426 = vmul.f32 %v424, 3.5
  %v427 = vmul.f32 %v425, 3.5
  %v428 = vadd.f32 %v426, -5.0
  %v429 = vadd.f32 %v427, -5.0
  %v430 = vmul.f32 %v428, 1.442695
  %v431 = vpow.pop %v430
  %v432 = vmul.f32 %v429, 1.442695
  %v433 = vpow.pop %v432
  %v434 = vlaneseq
  %v435 = vand.u32 %v434, 127
  %vm436 = vcmp.lt.s32.totalorder %v435, 6
  %vm437 = vcmp.lt.s32.totalorder %v435, 12
  %v438 = vsel %vm437, %v431, 0.0
  %v439 = vsel %vm437, %v433, 0.0
  %v440 = vsel %vm436, %v420, %v438
  %v441 = vsel %vm436, %v421, %v439
  %442 = vst [vmem:[%s9] sm:$0xff] %v440
  %443 = vst [vmem:[%s9 + $0x8] sm:$0xff] %v441
  // Predicated region
  $region38: #{diag_gaussian_option_actor_forward.1} parent=0 // pred_check
    _
  $region39: #{diag_gaussian_option_actor_forward.1} parent=0 // pred_check_branch
    %445 = sbr.rel (0) target = $region41
  $region40: #{diag_gaussian_option_actor_forward.1} parent=0 // pred_region
    _
  $region41: #{diag_gaussian_option_actor_forward.1} parent=0 // pred_fallthru
    _
  // Predicated region
  $region42: #{diag_gaussian_option_actor_forward.1} parent=0 // pred_check
    _
  $region43: #{diag_gaussian_option_actor_forward.1} parent=0 // pred_check_branch
    %447 = sbr.rel (0) target = $region45
  $region44: #{diag_gaussian_option_actor_forward.1} parent=0 // pred_region
    _
  $region45: #{diag_gaussian_option_actor_forward.1} parent=0 // pred_fallthru
    _

</llo_original>
